<compile_context>
chip_gen: v6e
topology: v6e:2x2x1
jax: 0.10.0
libtpu: 0.0.40
codegen_flags: <defaults>
</compile_context>

<pallas_src>
import jax
import jax.numpy as jnp
from jax.experimental import pallas as pl
from jax.experimental.pallas import tpu as pltpu


def _round_up(v, m):
    return ((v + m - 1) // m) * m


def _gnn_kernel(pool_ref, self_ref, comb_ref, rhs_ref, wout_ref,
                out_ref, acc_ref):
    """Grid = (graph-0 row tiles i [parallel], reduction tiles k [arbitrary]).

    pool : [1, tile_rows]        f32  mean-pool weights of graph 0, this tile
    self : [tile_rows, H]        f32  pre-projected self term x @ w_self
    comb : [tile_rows, tile_red] int8 combined [adj | edge-scatter] tile
    rhs  : [tile_red, H]         bf16 pre-projected [x@w_nbr ; edge_attr@w_edge]
    wout : [H, C]                f32  readout weights
    out  : [1, 8, C]             f32  partial (pool_i @ relu(h_i)) @ w_out
    acc  : [tile_rows, H]        f32  running self + [adj|scat] @ rhs
    """
    k = pl.program_id(1)
    nk = pl.num_programs(1)

    @pl.when(k == 0)
    def _():
        acc_ref[...] = self_ref[...]

    # int8 -> bf16 upcast (VPU, hidden under the DMA); bf16 MXU, f32 acc.
    acc_ref[...] += jnp.dot(comb_ref[...].astype(jnp.bfloat16), rhs_ref[...],
                            preferred_element_type=jnp.float32)

    @pl.when(k == nk - 1)
    def _():
        h = jnp.maximum(acc_ref[...], 0.0)                       # ReLU
        pooled = jnp.dot(pool_ref[...], h,
                         preferred_element_type=jnp.float32)     # [1, H]
        res = jnp.dot(pooled, wout_ref[...],
                      preferred_element_type=jnp.float32)        # [1, C]
        out_ref[...] = jnp.broadcast_to(res.reshape(1, 1, -1), out_ref.shape)


def exp_model_forward(x, edge_index, edge_attr1, y1, batch1, ptr1, params,
                      *, tile_rows=256, tile_red=512):
    """JAX/Pallas equivalent of ExpModel.forward; returns output[0] (shape C)."""
    del y1  # Batch metadata only; not used by the forward compute.

    N, _ = x.shape
    E = edge_index.shape[1]
    H = params["w_self"].shape[1]
    C = params["w_out"].shape[1]

    # Only output[0] is returned -> restrict all row work to graph 0's nodes.
    # ptr1 is host-side Batch metadata (concrete), like torch_geometric's.
    n0 = int(ptr1[1]) if ptr1.shape[0] > 1 else N

    row_pad = _round_up(max(n0, 1), tile_rows)
    n_col_pad = _round_up(N, 128)
    e_col_pad = _round_up(E, 128)
    k_pad = _round_up(n_col_pad + e_col_pad, tile_red)
    num_i = row_pad // tile_rows
    num_k = k_pad // tile_red

    src = edge_index[0]
    dst = edge_index[1]

    # Combined structural operator [adj | edge-scatter], graph-0 rows only,
    # stored int8 (multi-edge counts exact up to 127).  Scatter indexing is
    # wrapper-side glue (plain JAX).
    dst_r = jnp.where(dst < n0, dst, row_pad)        # OOB rows -> dropped
    comb = jnp.zeros((row_pad, k_pad), jnp.int32)
    comb = comb.at[dst_r, src].add(1, mode="drop")
    comb = comb.at[dst_r, n_col_pad + jnp.arange(E)].add(1, mode="drop")
    comb = comb.astype(jnp.int8)

    # Pre-projected RHS [x @ w_nbr ; edge_attr @ w_edge] (bf16) and self term.
    rhs = jnp.zeros((k_pad, H), jnp.bfloat16)
    rhs = rhs.at[:N].set((x @ params["w_nbr"]).astype(jnp.bfloat16))
    rhs = rhs.at[n_col_pad:n_col_pad + E].set(
        (edge_attr1 @ params["w_edge"]).astype(jnp.bfloat16))

    self_rows = jnp.zeros((row_pad, H), jnp.float32)
    self_rows = self_rows.at[:n0].set(
        (x[:n0] @ params["w_self"]).astype(jnp.float32))

    # Mean-pool weights of graph 0 (single pooled row; bias folded outside).
    mask0 = (batch1 == 0).astype(jnp.float32)
    count0 = jnp.maximum(mask0.sum(), 1.0)
    pool0 = jnp.zeros((1, row_pad), jnp.float32).at[0, :n0].set(
        mask0[:n0] / count0)

    w_out = params["w_out"].astype(jnp.float32)

    flops = (2 * row_pad * k_pad * H          # aggregation matmul
             + 2 * row_pad * H                # pooling
             + 2 * H * C)                     # readout
    bytes_accessed = int(comb.size                        # int8
                         + rhs.size * 2                   # bf16
                         + (self_rows.size + pool0.size + w_out.size
                            + num_i * 8 * C) * 4)         # f32

    # VMEM: double-buffered tiles + the f32 accumulator scratch, with headroom.
    tile_bytes = (2 * (tile_rows * tile_red               # comb (int8)
                       + tile_rows * 4                    # pool row (f32)
                       + tile_rows * H * 4                # self (f32)
                       + tile_red * H * 2                 # rhs (bf16)
                       + H * C * 4                        # w_out (f32)
                       + 8 * C * 4)                       # out tile (f32)
                  + tile_rows * H * 4)                    # accumulator
    vmem_limit = int(min(64 * 1024 * 1024,                # v7x physical cap
                         2 * tile_bytes + 8 * 1024 * 1024))

    grid_spec = pltpu.PrefetchScalarGridSpec(
        num_scalar_prefetch=0,
        grid=(num_i, num_k),
        in_specs=[
            pl.BlockSpec((1, tile_rows), lambda i, k: (0, i)),          # pool
            pl.BlockSpec((tile_rows, H), lambda i, k: (i, 0)),          # self
            pl.BlockSpec((tile_rows, tile_red), lambda i, k: (i, k)),   # comb
            pl.BlockSpec((tile_red, H), lambda i, k: (k, 0)),           # rhs
            pl.BlockSpec((H, C), lambda i, k: (0, 0)),                  # w_out
        ],
        out_specs=pl.BlockSpec((1, 8, C), lambda i, k: (i, 0, 0)),
        scratch_shapes=[pltpu.VMEM((tile_rows, H), jnp.float32)],
    )

    out_partial = pl.pallas_call(
        _gnn_kernel,
        out_shape=jax.ShapeDtypeStruct((num_i, 8, C), jnp.float32),
        grid_spec=grid_spec,
        compiler_params=pltpu.CompilerParams(
            dimension_semantics=("parallel", "arbitrary"),
            vmem_limit_bytes=vmem_limit),
        cost_estimate=pl.CostEstimate(
            flops=flops, transcendentals=0, bytes_accessed=bytes_accessed),
    )(pool0, self_rows, comb, rhs, w_out)

    # Sum partial pooled contributions across row tiles; fold bias here.
    return out_partial[:, 0, :].sum(axis=0) + params["b_out"][0]


def _reference(x, edge_index, edge_attr1, batch1, params):
    """Pure-JAX f32 reference of the same forward (correctness check)."""
    N = x.shape[0]
    src, dst = edge_index[0], edge_index[1]
    h = (x @ params["w_self"]
         + jax.ops.segment_sum(x[src], dst, num_segments=N) @ params["w_nbr"]
         + jax.ops.segment_sum(edge_attr1, dst,
                               num_segments=N) @ params["w_edge"])
    h = jnp.maximum(h, 0.0)
    mask0 = (batch1 == 0).astype(jnp.float32)
    pooled = (mask0[:, None] * h).sum(0) / jnp.maximum(mask0.sum(), 1.0)
    return pooled @ params["w_out"] + params["b_out"][0]


def init_params(key, fin, fe, hidden, n_classes):
    ks = jax.random.split(key, 5)
    scale = 0.1
    return {
        "w_self": scale * jax.random.normal(ks[0], (fin, hidden), jnp.float32),
        "w_nbr": scale * jax.random.normal(ks[1], (fin, hidden), jnp.float32),
        "w_edge": scale * jax.random.normal(ks[2], (fe, hidden), jnp.float32),
        "w_out": scale * jax.random.normal(ks[3], (hidden, n_classes),
                                           jnp.float32),
        "b_out": scale * jax.random.normal(ks[4], (1, n_classes), jnp.float32),
    }


if __name__ == "__main__":
    key = jax.random.PRNGKey(0)
    k_x, k_e, k_ea, k_p = jax.random.split(key, 4)

    # Small synthetic batched graph: 2 graphs, 16 nodes total, 32 edges.
    N, E, Fin, Fe, H, C, G = 16, 32, 8, 8, 32, 4, 2

    x = jax.random.normal(k_x, (N, Fin), jnp.float32)
    edge_index = jax.random.randint(k_e, (2, E), 0, N, jnp.int32)
    edge_attr1 = jax.random.normal(k_ea, (E, Fe), jnp.float32)
    y1 = jnp.zeros((G,), jnp.int32)
    batch1 = jnp.concatenate([jnp.zeros((N // 2,), jnp.int32),
                              jnp.ones((N // 2,), jnp.int32)])
    ptr1 = jnp.array([0, N // 2, N], jnp.int32)

    params = init_params(k_p, Fin, Fe, H, C)

    out = exp_model_forward(x, edge_index, edge_attr1, y1, batch1, ptr1,
                            params)
    jax.block_until_ready(out)
    assert out.shape == (C,)

    ref = _reference(x, edge_index, edge_attr1, batch1, params)
    assert jnp.allclose(out, ref, rtol=3e-2, atol=3e-2), (out, ref)

    print("KERNEL_OK")
</pallas_src>

<mosaic_0001>
module attributes {stable_mosaic.version = 11 : i64} {
  func.func @_gnn_kernel(%arg0: i32, %arg1: i32, %arg2: memref<1x256xf32, #tpu.memory_space<vmem>>, %arg3: memref<256x32xf32, #tpu.memory_space<vmem>>, %arg4: memref<256x512xi8, #tpu.memory_space<vmem>>, %arg5: memref<512x32xbf16, #tpu.memory_space<vmem>>, %arg6: memref<32x4xf32, #tpu.memory_space<vmem>>, %arg7: memref<1x8x4xf32, #tpu.memory_space<vmem>>, %arg8: memref<256x32xf32, #tpu.memory_space<vmem>>) attributes {dimension_semantics = [#tpu.dimension_semantics<parallel>, #tpu.dimension_semantics<arbitrary>], iteration_bounds = array<i64: 1, 1>, scalar_prefetch = 0 : i64, scratch_operands = 1 : i64, tpu.core_type = #tpu.core_type<tc>, window_params = [{transform_indices = @transform_0, window_bounds = array<i64: 1, 256>}, {transform_indices = @transform_1, window_bounds = array<i64: 256, 32>}, {transform_indices = @transform_2, window_bounds = array<i64: 256, 512>}, {transform_indices = @transform_3, window_bounds = array<i64: 512, 32>}, {pipeline_mode = #tpu.pipeline_mode<synchronous>, transform_indices = @transform_4, window_bounds = array<i64: 32, 4>}, {transform_indices = @transform_5, window_bounds = array<i64: 1, 8, 4>}]} {
    %c0_i32 = arith.constant 0 : i32
    %0 = arith.cmpi eq, %arg1, %c0_i32 : i32
    %1 = arith.extui %0 : i1 to i32
    %c0_i32_0 = arith.constant 0 : i32
    %2 = arith.cmpi ne, %1, %c0_i32_0 : i32
    scf.if %2 {
      %c0_10 = arith.constant 0 : index
      %c0_11 = arith.constant 0 : index
      %13 = vector.load %arg3[%c0_10, %c0_11] : memref<256x32xf32, #tpu.memory_space<vmem>>, vector<256x32xf32>
      %c0_12 = arith.constant 0 : index
      %c0_13 = arith.constant 0 : index
      %14 = vector.load %arg8[%c0_12, %c0_13] : memref<256x32xf32, #tpu.memory_space<vmem>>, vector<256x32xf32>
      tpu.vector_store %arg8[%c0_12, %c0_13], %13 {strides = array<i32>} : memref<256x32xf32, #tpu.memory_space<vmem>>, vector<256x32xf32>,
    } else {
    }
    %c0 = arith.constant 0 : index
    %c0_1 = arith.constant 0 : index
    %3 = vector.load %arg8[%c0, %c0_1] : memref<256x32xf32, #tpu.memory_space<vmem>>, vector<256x32xf32>
    %c0_2 = arith.constant 0 : index
    %c0_3 = arith.constant 0 : index
    %4 = vector.load %arg4[%c0_2, %c0_3] : memref<256x512xi8, #tpu.memory_space<vmem>>, vector<256x512xi8>
    %5 = arith.sitofp %4 : vector<256x512xi8> to vector<256x512xbf16>
    %c0_4 = arith.constant 0 : index
    %c0_5 = arith.constant 0 : index
    %6 = vector.load %arg5[%c0_4, %c0_5] : memref<512x32xbf16, #tpu.memory_space<vmem>>, vector<512x32xbf16>
    %cst = arith.constant dense<0.000000e+00> : vector<256x32xf32>
    %7 = tpu.matmul %5, %6, %cst {dimension_numbers = #tpu.dot_dimension_numbers<[1], [0], [0], [1], [0, 0, 1, 1], [], []>} : vector<256x512xbf16>, vector<512x32xbf16>, vector<256x32xf32> -> vector<256x32xf32>
    %8 = arith.addf %3, %7 : vector<256x32xf32>
    %c0_6 = arith.constant 0 : index
    %c0_7 = arith.constant 0 : index
    %9 = vector.load %arg8[%c0_6, %c0_7] : memref<256x32xf32, #tpu.memory_space<vmem>>, vector<256x32xf32>
    tpu.vector_store %arg8[%c0_6, %c0_7], %8 {strides = array<i32>} : memref<256x32xf32, #tpu.memory_space<vmem>>, vector<256x32xf32>,
    %c0_i32_8 = arith.constant 0 : i32
    %10 = arith.cmpi eq, %arg1, %c0_i32_8 : i32
    %11 = arith.extui %10 : i1 to i32
    %c0_i32_9 = arith.constant 0 : i32
    %12 = arith.cmpi ne, %11, %c0_i32_9 : i32
    scf.if %12 {
      %c0_10 = arith.constant 0 : index
      %c0_11 = arith.constant 0 : index
      %13 = vector.load %arg8[%c0_10, %c0_11] : memref<256x32xf32, #tpu.memory_space<vmem>>, vector<256x32xf32>
      %cst_12 = arith.constant 0.000000e+00 : f32
      %14 = vector.broadcast %cst_12 : f32 to vector<256x32xf32>
      %15 = arith.maximumf %13, %14 : vector<256x32xf32>
      %c0_13 = arith.constant 0 : index
      %c0_14 = arith.constant 0 : index
      %16 = vector.load %arg2[%c0_13, %c0_14] : memref<1x256xf32, #tpu.memory_space<vmem>>, vector<1x256xf32>
      %cst_15 = arith.constant dense<0.000000e+00> : vector<1x32xf32>
      %17 = tpu.matmul %16, %15, %cst_15 {dimension_numbers = #tpu.dot_dimension_numbers<[1], [0], [0], [1], [0, 0, 1, 1], [], []>} : vector<1x256xf32>, vector<256x32xf32>, vector<1x32xf32> -> vector<1x32xf32>
      %c0_16 = arith.constant 0 : index
      %c0_17 = arith.constant 0 : index
      %18 = vector.load %arg6[%c0_16, %c0_17] : memref<32x4xf32, #tpu.memory_space<vmem>>, vector<32x4xf32>
      %cst_18 = arith.constant dense<0.000000e+00> : vector<1x4xf32>
      %19 = tpu.matmul %17, %18, %cst_18 {dimension_numbers = #tpu.dot_dimension_numbers<[1], [0], [0], [1], [0, 0, 1, 1], [], []>} : vector<1x32xf32>, vector<32x4xf32>, vector<1x4xf32> -> vector<1x4xf32>
      %20 = vector.shape_cast %19 : vector<1x4xf32> to vector<1x1x4xf32>
      %21 = vector.shape_cast %20 : vector<1x1x4xf32> to vector<1x1x4xf32>
      %22 = vector.broadcast %21 : vector<1x1x4xf32> to vector<1x8x4xf32>
      %c0_19 = arith.constant 0 : index
      %c0_20 = arith.constant 0 : index
      %c0_21 = arith.constant 0 : index
      %23 = vector.load %arg7[%c0_19, %c0_20, %c0_21] : memref<1x8x4xf32, #tpu.memory_space<vmem>>, vector<1x8x4xf32>
      tpu.vector_store %arg7[%c0_19, %c0_20, %c0_21], %22 {strides = array<i32>} : memref<1x8x4xf32, #tpu.memory_space<vmem>>, vector<1x8x4xf32>,
    } else {
    }
    return
  }
  func.func @transform_0(%arg0: i32, %arg1: i32) -> (i32, i32) {
    %c0_i32 = arith.constant 0 : i32
    %c0_i32_0 = arith.constant 0 : i32
    return %c0_i32, %arg0 : i32, i32
  }
  func.func @transform_1(%arg0: i32, %arg1: i32) -> (i32, i32) {
    %c0_i32 = arith.constant 0 : i32
    %c0_i32_0 = arith.constant 0 : i32
    return %arg0, %c0_i32 : i32, i32
  }
  func.func @transform_2(%arg0: i32, %arg1: i32) -> (i32, i32) {
    %c0_i32 = arith.constant 0 : i32
    return %arg0, %arg1 : i32, i32
  }
  func.func @transform_3(%arg0: i32, %arg1: i32) -> (i32, i32) {
    %c0_i32 = arith.constant 0 : i32
    %c0_i32_0 = arith.constant 0 : i32
    return %arg1, %c0_i32 : i32, i32
  }
  func.func @transform_4(%arg0: i32, %arg1: i32) -> (i32, i32) {
    %c0_i32 = arith.constant 0 : i32
    %c0_i32_0 = arith.constant 0 : i32
    %c0_i32_1 = arith.constant 0 : i32
    return %c0_i32, %c0_i32_0 : i32, i32
  }
  func.func @transform_5(%arg0: i32, %arg1: i32) -> (i32, i32, i32) {
    %c0_i32 = arith.constant 0 : i32
    %c0_i32_0 = arith.constant 0 : i32
    %c0_i32_1 = arith.constant 0 : i32
    return %arg0, %c0_i32, %c0_i32_0 : i32, i32, i32
  }
}

</mosaic_0001>

<llo_original>
// kernel: tpu_custom_call.1
$region0: #{tpu_custom_call.1}
  #allocation0 [shape = 'u32[]', space=smem, size = 0x4, offset = 0x4, fixed_abs, tag = 'smem constant byte address 0x4 - core index']
  #allocation1 [shape = 'u32[144,128]{1,0:T(1,128)}', space=vmem, size = 0x12000, scoped, tag = 'internal scratch']
  #allocation2 [shape = 'f32[256,32]{1,0:T(8,128)}', space=vmem, size = 0x20000, scoped, tag = 'scratch operand']
  %s0 = inlined_call_operand.vmem [shape: f32[1,256], index: 0, kind: input, shape index: {}]
  %s1 = inlined_call_operand.vmem [shape: f32[256,32], index: 1, kind: input, shape index: {}]
  %s2 = inlined_call_operand.vmem [shape: s8[256,512], index: 2, kind: input, shape index: {}]
  %s3 = inlined_call_operand.vmem [shape: bf16[512,32], index: 3, kind: input, shape index: {}]
  %s4 = inlined_call_operand.vmem [shape: f32[32,4], index: 4, kind: input, shape index: {}]
  %s5 = inlined_call_operand.vmem [shape: f32[1,8,4], index: 5, kind: output, shape index: {}]
  %s6 = sld [smem:[#allocation0]]
  $region38: #{tpu_custom_call.1} parent=0
    _
  %s8 = ssub.s32 1, %s6
  %s9 = scalar_select 0, %s8, %s6
  // Predicated region
  $region2: #{tpu_custom_call.1} parent=0 // pred_check
    _
  $region3: #{tpu_custom_call.1} parent=0 // pred_check_branch
    %11 = sbr.rel (0) target = $region5
  $region4: #{tpu_custom_call.1} parent=0 // pred_region
    _
  $region5: #{tpu_custom_call.1} parent=0 // pred_fallthru
    _
  // Predicated region
  $region6: #{tpu_custom_call.1} parent=0 // pred_check
    _
  $region7: #{tpu_custom_call.1} parent=0 // pred_check_branch
    %13 = sbr.rel (0) target = $region9
  $region8: #{tpu_custom_call.1} parent=0 // pred_region
    _
  $region9: #{tpu_custom_call.1} parent=0 // pred_fallthru
    _
  // Predicated region
  $region10: #{tpu_custom_call.1} parent=0 // pred_check
    _
  $region11: #{tpu_custom_call.1} parent=0 // pred_check_branch
    %15 = sbr.rel (0) target = $region13
  $region12: #{tpu_custom_call.1} parent=0 // pred_region
    _
  $region13: #{tpu_custom_call.1} parent=0 // pred_fallthru
    _
  // Predicated region
  $region14: #{tpu_custom_call.1} parent=0 // pred_check
    _
  $region15: #{tpu_custom_call.1} parent=0 // pred_check_branch
    %17 = sbr.rel (0) target = $region17
  $region16: #{tpu_custom_call.1} parent=0 // pred_region
    _
  $region17: #{tpu_custom_call.1} parent=0 // pred_fallthru
    _
  // Predicated region
  $region18: #{tpu_custom_call.1} parent=0 // pred_check
    _
  $region19: #{tpu_custom_call.1} parent=0 // pred_check_branch
    %19 = sbr.rel (0) target = $region21
  $region20: #{tpu_custom_call.1} parent=0 // pred_region
    _
  $region21: #{tpu_custom_call.1} parent=0 // pred_fallthru
    _
  %p21 = scmp.eq.s32.totalorder 0, 0
  // Predicated region
  $region22: #{tpu_custom_call.1} parent=0 // pred_check
    %p22 = pneg %p21
  $region23: #{tpu_custom_call.1} parent=0 // pred_check_branch
    %24 = sbr.rel (%p22) target = $region25
  $region24: #{tpu_custom_call.1} parent=0 // pred_region
    %v25 = vld [vmem:[%s1] sm:$0xff]
    %v26 = vld [vmem:[%s1 + $0x8] sm:$0xff]
    %v27 = vld [vmem:[%s1 + $0x10] sm:$0xff]
    %v28 = vld [vmem:[%s1 + $0x18] sm:$0xff]
    %v29 = vld [vmem:[%s1 + $0x20] sm:$0xff]
    %v30 = vld [vmem:[%s1 + $0x28] sm:$0xff]
    %v31 = vld [vmem:[%s1 + $0x30] sm:$0xff]
    %v32 = vld [vmem:[%s1 + $0x38] sm:$0xff]
    %v33 = vld [vmem:[%s1 + $0x40] sm:$0xff]
    %v34 = vld [vmem:[%s1 + $0x48] sm:$0xff]
    %v35 = vld [vmem:[%s1 + $0x50] sm:$0xff]
    %v36 = vld [vmem:[%s1 + $0x58] sm:$0xff]
    %v37 = vld [vmem:[%s1 + $0x60] sm:$0xff]
    %v38 = vld [vmem:[%s1 + $0x68] sm:$0xff]
    %v39 = vld [vmem:[%s1 + $0x70] sm:$0xff]
    %v40 = vld [vmem:[%s1 + $0x78] sm:$0xff]
    %v41 = vld [vmem:[%s1 + $0x80] sm:$0xff]
    %v42 = vld [vmem:[%s1 + $0x88] sm:$0xff]
    %v43 = vld [vmem:[%s1 + $0x90] sm:$0xff]
    %v44 = vld [vmem:[%s1 + $0x98] sm:$0xff]
    %v45 = vld [vmem:[%s1 + $0xa0] sm:$0xff]
    %v46 = vld [vmem:[%s1 + $0xa8] sm:$0xff]
    %v47 = vld [vmem:[%s1 + $0xb0] sm:$0xff]
    %v48 = vld [vmem:[%s1 + $0xb8] sm:$0xff]
    %v49 = vld [vmem:[%s1 + $0xc0] sm:$0xff]
    %v50 = vld [vmem:[%s1 + $0xc8] sm:$0xff]
    %v51 = vld [vmem:[%s1 + $0xd0] sm:$0xff]
    %v52 = vld [vmem:[%s1 + $0xd8] sm:$0xff]
    %v53 = vld [vmem:[%s1 + $0xe0] sm:$0xff]
    %v54 = vld [vmem:[%s1 + $0xe8] sm:$0xff]
    %v55 = vld [vmem:[%s1 + $0xf0] sm:$0xff]
    %v56 = vld [vmem:[%s1 + $0xf8] sm:$0xff]
    %vm57 = vcmask 261120
    %58 = vst.msk [vmem:[#allocation2] sm:$0xff] %vm57, %v25
    %59 = vst.msk [vmem:[#allocation2 + $0x8] sm:$0xff] %vm57, %v26
    %60 = vst.msk [vmem:[#allocation2 + $0x10] sm:$0xff] %vm57, %v27
    %61 = vst.msk [vmem:[#allocation2 + $0x18] sm:$0xff] %vm57, %v28
    %62 = vst.msk [vmem:[#allocation2 + $0x20] sm:$0xff] %vm57, %v29
    %63 = vst.msk [vmem:[#allocation2 + $0x28] sm:$0xff] %vm57, %v30
    %64 = vst.msk [vmem:[#allocation2 + $0x30] sm:$0xff] %vm57, %v31
    %65 = vst.msk [vmem:[#allocation2 + $0x38] sm:$0xff] %vm57, %v32
    %66 = vst.msk [vmem:[#allocation2 + $0x40] sm:$0xff] %vm57, %v33
    %67 = vst.msk [vmem:[#allocation2 + $0x48] sm:$0xff] %vm57, %v34
    %68 = vst.msk [vmem:[#allocation2 + $0x50] sm:$0xff] %vm57, %v35
    %69 = vst.msk [vmem:[#allocation2 + $0x58] sm:$0xff] %vm57, %v36
    %70 = vst.msk [vmem:[#allocation2 + $0x60] sm:$0xff] %vm57, %v37
    %71 = vst.msk [vmem:[#allocation2 + $0x68] sm:$0xff] %vm57, %v38
    %72 = vst.msk [vmem:[#allocation2 + $0x70] sm:$0xff] %vm57, %v39
    %73 = vst.msk [vmem:[#allocation2 + $0x78] sm:$0xff] %vm57, %v40
    %74 = vst.msk [vmem:[#allocation2 + $0x80] sm:$0xff] %vm57, %v41
    %75 = vst.msk [vmem:[#allocation2 + $0x88] sm:$0xff] %vm57, %v42
    %76 = vst.msk [vmem:[#allocation2 + $0x90] sm:$0xff] %vm57, %v43
    %77 = vst.msk [vmem:[#allocation2 + $0x98] sm:$0xff] %vm57, %v44
    %78 = vst.msk [vmem:[#allocation2 + $0xa0] sm:$0xff] %vm57, %v45
    %79 = vst.msk [vmem:[#allocation2 + $0xa8] sm:$0xff] %vm57, %v46
    %80 = vst.msk [vmem:[#allocation2 + $0xb0] sm:$0xff] %vm57, %v47
    %81 = vst.msk [vmem:[#allocation2 + $0xb8] sm:$0xff] %vm57, %v48
    %82 = vst.msk [vmem:[#allocation2 + $0xc0] sm:$0xff] %vm57, %v49
    %83 = vst.msk [vmem:[#allocation2 + $0xc8] sm:$0xff] %vm57, %v50
    %84 = vst.msk [vmem:[#allocation2 + $0xd0] sm:$0xff] %vm57, %v51
    %85 = vst.msk [vmem:[#allocation2 + $0xd8] sm:$0xff] %vm57, %v52
    %86 = vst.msk [vmem:[#allocation2 + $0xe0] sm:$0xff] %vm57, %v53
    %87 = vst.msk [vmem:[#allocation2 + $0xe8] sm:$0xff] %vm57, %v54
    %88 = vst.msk [vmem:[#allocation2 + $0xf0] sm:$0xff] %vm57, %v55
    %89 = vst.msk [vmem:[#allocation2 + $0xf8] sm:$0xff] %vm57, %v56
  $region25: #{tpu_custom_call.1} parent=0 // pred_fallthru
    _
  %v90 = vld [vmem:[#allocation2] sm:$0xff]
  %v91 = vld [vmem:[#allocation2 + $0x8] sm:$0xff]
  %v92 = vld [vmem:[#allocation2 + $0x10] sm:$0xff]
  %v93 = vld [vmem:[#allocation2 + $0x18] sm:$0xff]
  %v94 = vld [vmem:[#allocation2 + $0x20] sm:$0xff]
  %v95 = vld [vmem:[#allocation2 + $0x28] sm:$0xff]
  %v96 = vld [vmem:[#allocation2 + $0x30] sm:$0xff]
  %v97 = vld [vmem:[#allocation2 + $0x38] sm:$0xff]
  %v98 = vld [vmem:[#allocation2 + $0x40] sm:$0xff]
  %v99 = vld [vmem:[#allocation2 + $0x48] sm:$0xff]
  %v100 = vld [vmem:[#allocation2 + $0x50] sm:$0xff]
  %v101 = vld [vmem:[#allocation2 + $0x58] sm:$0xff]
  %v102 = vld [vmem:[#allocation2 + $0x60] sm:$0xff]
  %v103 = vld [vmem:[#allocation2 + $0x68] sm:$0xff]
  %v104 = vld [vmem:[#allocation2 + $0x70] sm:$0xff]
  %v105 = vld [vmem:[#allocation2 + $0x78] sm:$0xff]
  %v106 = vld [vmem:[#allocation2 + $0x80] sm:$0xff]
  %v107 = vld [vmem:[#allocation2 + $0x88] sm:$0xff]
  %v108 = vld [vmem:[#allocation2 + $0x90] sm:$0xff]
  %v109 = vld [vmem:[#allocation2 + $0x98] sm:$0xff]
  %v110 = vld [vmem:[#allocation2 + $0xa0] sm:$0xff]
  %v111 = vld [vmem:[#allocation2 + $0xa8] sm:$0xff]
  %v112 = vld [vmem:[#allocation2 + $0xb0] sm:$0xff]
  %v113 = vld [vmem:[#allocation2 + $0xb8] sm:$0xff]
  %v114 = vld [vmem:[#allocation2 + $0xc0] sm:$0xff]
  %v115 = vld [vmem:[#allocation2 + $0xc8] sm:$0xff]
  %v116 = vld [vmem:[#allocation2 + $0xd0] sm:$0xff]
  %v117 = vld [vmem:[#allocation2 + $0xd8] sm:$0xff]
  %v118 = vld [vmem:[#allocation2 + $0xe0] sm:$0xff]
  %v119 = vld [vmem:[#allocation2 + $0xe8] sm:$0xff]
  %v120 = vld [vmem:[#allocation2 + $0xf0] sm:$0xff]
  %v121 = vld [vmem:[#allocation2 + $0xf8] sm:$0xff]
  %v122 = vld [vmem:[%s2] sm:$0xff]
  %v123 = vld [vmem:[%s2 + $0x8] sm:$0xff]
  %v124 = vld [vmem:[%s2 + $0x10] sm:$0xff]
  %v125 = vld [vmem:[%s2 + $0x18] sm:$0xff]
  %v126 = vld [vmem:[%s2 + $0x20] sm:$0xff]
  %v127 = vld [vmem:[%s2 + $0x28] sm:$0xff]
  %v128 = vld [vmem:[%s2 + $0x30] sm:$0xff]
  %v129 = vld [vmem:[%s2 + $0x38] sm:$0xff]
  %v130 = vld [vmem:[%s2 + $0x40] sm:$0xff]
  %v131 = vld [vmem:[%s2 + $0x48] sm:$0xff]
  %v132 = vld [vmem:[%s2 + $0x50] sm:$0xff]
  %v133 = vld [vmem:[%s2 + $0x58] sm:$0xff]
  %v134 = vld [vmem:[%s2 + $0x60] sm:$0xff]
  %v135 = vld [vmem:[%s2 + $0x68] sm:$0xff]
  %v136 = vld [vmem:[%s2 + $0x70] sm:$0xff]
  %v137 = vld [vmem:[%s2 + $0x78] sm:$0xff]
  %v138 = vld [vmem:[%s2 + $0x80] sm:$0xff]
  %v139 = vld [vmem:[%s2 + $0x88] sm:$0xff]
  %v140 = vld [vmem:[%s2 + $0x90] sm:$0xff]
  %v141 = vld [vmem:[%s2 + $0x98] sm:$0xff]
  %v142 = vld [vmem:[%s2 + $0xa0] sm:$0xff]
  %v143 = vld [vmem:[%s2 + $0xa8] sm:$0xff]
  %v144 = vld [vmem:[%s2 + $0xb0] sm:$0xff]
  %v145 = vld [vmem:[%s2 + $0xb8] sm:$0xff]
  %v146 = vld [vmem:[%s2 + $0xc0] sm:$0xff]
  %v147 = vld [vmem:[%s2 + $0xc8] sm:$0xff]
  %v148 = vld [vmem:[%s2 + $0xd0] sm:$0xff]
  %v149 = vld [vmem:[%s2 + $0xd8] sm:$0xff]
  %v150 = vld [vmem:[%s2 + $0xe0] sm:$0xff]
  %v151 = vld [vmem:[%s2 + $0xe8] sm:$0xff]
  %v152 = vld [vmem:[%s2 + $0xf0] sm:$0xff]
  %v153 = vld [vmem:[%s2 + $0xf8] sm:$0xff]
  %v154 = vunpack.c.l.s8.bf16 %v122
  %v155 = vunpack.c.l.s8.bf16 %v123
  %v156 = vunpack.c.l.s8.bf16 %v124
  %v157 = vunpack.c.l.s8.bf16 %v125
  %v158 = vunpack.c.h.s8.bf16 %v122
  %v159 = vunpack.c.h.s8.bf16 %v123
  %v160 = vunpack.c.h.s8.bf16 %v124
  %v161 = vunpack.c.h.s8.bf16 %v125
  %v162 = vunpack.c.l.s8.bf16 %v126
  %v163 = vunpack.c.l.s8.bf16 %v127
  %v164 = vunpack.c.l.s8.bf16 %v128
  %v165 = vunpack.c.l.s8.bf16 %v129
  %v166 = vunpack.c.h.s8.bf16 %v126
  %v167 = vunpack.c.h.s8.bf16 %v127
  %v168 = vunpack.c.h.s8.bf16 %v128
  %v169 = vunpack.c.h.s8.bf16 %v129
  %v170 = vunpack.c.l.s8.bf16 %v130
  %v171 = vunpack.c.l.s8.bf16 %v131
  %v172 = vunpack.c.l.s8.bf16 %v132
  %v173 = vunpack.c.l.s8.bf16 %v133
  %v174 = vunpack.c.h.s8.bf16 %v130
  %v175 = vunpack.c.h.s8.bf16 %v131
  %v176 = vunpack.c.h.s8.bf16 %v132
  %v177 = vunpack.c.h.s8.bf16 %v133
  %v178 = vunpack.c.l.s8.bf16 %v134
  %v179 = vunpack.c.l.s8.bf16 %v135
  %v180 = vunpack.c.l.s8.bf16 %v136
  %v181 = vunpack.c.l.s8.bf16 %v137
  %v182 = vunpack.c.h.s8.bf16 %v134
  %v183 = vunpack.c.h.s8.bf16 %v135
  %v184 = vunpack.c.h.s8.bf16 %v136
  %v185 = vunpack.c.h.s8.bf16 %v137
  %v186 = vunpack.c.l.s8.bf16 %v138
  %v187 = vunpack.c.l.s8.bf16 %v139
  %v188 = vunpack.c.l.s8.bf16 %v140
  %v189 = vunpack.c.l.s8.bf16 %v141
  %v190 = vunpack.c.h.s8.bf16 %v138
  %v191 = vunpack.c.h.s8.bf16 %v139
  %v192 = vunpack.c.h.s8.bf16 %v140
  %v193 = vunpack.c.h.s8.bf16 %v141
  %v194 = vunpack.c.l.s8.bf16 %v142
  %v195 = vunpack.c.l.s8.bf16 %v143
  %v196 = vunpack.c.l.s8.bf16 %v144
  %v197 = vunpack.c.l.s8.bf16 %v145
  %v198 = vunpack.c.h.s8.bf16 %v142
  %v199 = vunpack.c.h.s8.bf16 %v143
  %v200 = vunpack.c.h.s8.bf16 %v144
  %v201 = vunpack.c.h.s8.bf16 %v145
  %v202 = vunpack.c.l.s8.bf16 %v146
  %v203 = vunpack.c.l.s8.bf16 %v147
  %v204 = vunpack.c.l.s8.bf16 %v148
  %v205 = vunpack.c.l.s8.bf16 %v149
  %v206 = vunpack.c.h.s8.bf16 %v146
  %v207 = vunpack.c.h.s8.bf16 %v147
  %v208 = vunpack.c.h.s8.bf16 %v148
  %v209 = vunpack.c.h.s8.bf16 %v149
  %v210 = vunpack.c.l.s8.bf16 %v150
  %v211 = vunpack.c.l.s8.bf16 %v151
  %v212 = vunpack.c.l.s8.bf16 %v152
  %v213 = vunpack.c.l.s8.bf16 %v153
  %v214 = vunpack.c.h.s8.bf16 %v150
  %v215 = vunpack.c.h.s8.bf16 %v151
  %v216 = vunpack.c.h.s8.bf16 %v152
  %v217 = vunpack.c.h.s8.bf16 %v153
  %v218 = vld [vmem:[%s3] sm:$0xf]
  %v219 = vld [vmem:[%s3 + $0x4] sm:$0xf]
  %v220 = vld [vmem:[%s3 + $0x8] sm:$0xf]
  %v221 = vld [vmem:[%s3 + $0xc] sm:$0xf]
  %v222 = vld [vmem:[%s3 + $0x10] sm:$0xf]
  %v223 = vld [vmem:[%s3 + $0x14] sm:$0xf]
  %v224 = vld [vmem:[%s3 + $0x18] sm:$0xf]
  %v225 = vld [vmem:[%s3 + $0x1c] sm:$0xf]
  %v226 = vld [vmem:[%s3 + $0x20] sm:$0xf]
  %v227 = vld [vmem:[%s3 + $0x24] sm:$0xf]
  %v228 = vld [vmem:[%s3 + $0x28] sm:$0xf]
  %v229 = vld [vmem:[%s3 + $0x2c] sm:$0xf]
  %v230 = vld [vmem:[%s3 + $0x30] sm:$0xf]
  %v231 = vld [vmem:[%s3 + $0x34] sm:$0xf]
  %v232 = vld [vmem:[%s3 + $0x38] sm:$0xf]
  %v233 = vld [vmem:[%s3 + $0x3c] sm:$0xf]
  %v234 = vld [vmem:[%s3 + $0x40] sm:$0xf]
  %v235 = vld [vmem:[%s3 + $0x44] sm:$0xf]
  %v236 = vld [vmem:[%s3 + $0x48] sm:$0xf]
  %v237 = vld [vmem:[%s3 + $0x4c] sm:$0xf]
  %v238 = vld [vmem:[%s3 + $0x50] sm:$0xf]
  %v239 = vld [vmem:[%s3 + $0x54] sm:$0xf]
  %v240 = vld [vmem:[%s3 + $0x58] sm:$0xf]
  %v241 = vld [vmem:[%s3 + $0x5c] sm:$0xf]
  %v242 = vld [vmem:[%s3 + $0x60] sm:$0xf]
  %v243 = vld [vmem:[%s3 + $0x64] sm:$0xf]
  %v244 = vld [vmem:[%s3 + $0x68] sm:$0xf]
  %v245 = vld [vmem:[%s3 + $0x6c] sm:$0xf]
  %v246 = vld [vmem:[%s3 + $0x70] sm:$0xf]
  %v247 = vld [vmem:[%s3 + $0x74] sm:$0xf]
  %v248 = vld [vmem:[%s3 + $0x78] sm:$0xf]
  %v249 = vld [vmem:[%s3 + $0x7c] sm:$0xf]
  %v250 = vld [vmem:[%s3 + $0x80] sm:$0xf]
  %v251 = vld [vmem:[%s3 + $0x84] sm:$0xf]
  %v252 = vld [vmem:[%s3 + $0x88] sm:$0xf]
  %v253 = vld [vmem:[%s3 + $0x8c] sm:$0xf]
  %v254 = vld [vmem:[%s3 + $0x90] sm:$0xf]
  %v255 = vld [vmem:[%s3 + $0x94] sm:$0xf]
  %v256 = vld [vmem:[%s3 + $0x98] sm:$0xf]
  %v257 = vld [vmem:[%s3 + $0x9c] sm:$0xf]
  %v258 = vld [vmem:[%s3 + $0xa0] sm:$0xf]
  %v259 = vld [vmem:[%s3 + $0xa4] sm:$0xf]
  %v260 = vld [vmem:[%s3 + $0xa8] sm:$0xf]
  %v261 = vld [vmem:[%s3 + $0xac] sm:$0xf]
  %v262 = vld [vmem:[%s3 + $0xb0] sm:$0xf]
  %v263 = vld [vmem:[%s3 + $0xb4] sm:$0xf]
  %v264 = vld [vmem:[%s3 + $0xb8] sm:$0xf]
  %v265 = vld [vmem:[%s3 + $0xbc] sm:$0xf]
  %v266 = vld [vmem:[%s3 + $0xc0] sm:$0xf]
  %v267 = vld [vmem:[%s3 + $0xc4] sm:$0xf]
  %v268 = vld [vmem:[%s3 + $0xc8] sm:$0xf]
  %v269 = vld [vmem:[%s3 + $0xcc] sm:$0xf]
  %v270 = vld [vmem:[%s3 + $0xd0] sm:$0xf]
  %v271 = vld [vmem:[%s3 + $0xd4] sm:$0xf]
  %v272 = vld [vmem:[%s3 + $0xd8] sm:$0xf]
  %v273 = vld [vmem:[%s3 + $0xdc] sm:$0xf]
  %v274 = vld [vmem:[%s3 + $0xe0] sm:$0xf]
  %v275 = vld [vmem:[%s3 + $0xe4] sm:$0xf]
  %v276 = vld [vmem:[%s3 + $0xe8] sm:$0xf]
  %v277 = vld [vmem:[%s3 + $0xec] sm:$0xf]
  %v278 = vld [vmem:[%s3 + $0xf0] sm:$0xf]
  %v279 = vld [vmem:[%s3 + $0xf4] sm:$0xf]
  %v280 = vld [vmem:[%s3 + $0xf8] sm:$0xf]
  %v281 = vld [vmem:[%s3 + $0xfc] sm:$0xf]
  %v346 = vunpack.c.l.b16 %v218
  %v347 = vunpack.c.l.b16 %v219
  %v348 = vunpack.c.l.b16 %v220
  %v349 = vunpack.c.l.b16 %v221
  %v350 = vunpack.c.l.b16 %v222
  %v351 = vunpack.c.l.b16 %v223
  %v352 = vunpack.c.l.b16 %v224
  %v353 = vunpack.c.l.b16 %v225
  %v354 = vunpack.c.l.b16 %v226
  %v355 = vunpack.c.l.b16 %v227
  %v356 = vunpack.c.l.b16 %v228
  %v357 = vunpack.c.l.b16 %v229
  %v358 = vunpack.c.l.b16 %v230
  %v359 = vunpack.c.l.b16 %v231
  %v360 = vunpack.c.l.b16 %v232
  %v361 = vunpack.c.l.b16 %v233
  %v362 = vunpack.c.l.b16 %v234
  %v363 = vunpack.c.l.b16 %v235
  %v364 = vunpack.c.l.b16 %v236
  %v365 = vunpack.c.l.b16 %v237
  %v366 = vunpack.c.l.b16 %v238
  %v367 = vunpack.c.l.b16 %v239
  %v368 = vunpack.c.l.b16 %v240
  %v369 = vunpack.c.l.b16 %v241
  %v370 = vunpack.c.l.b16 %v242
  %v371 = vunpack.c.l.b16 %v243
  %v372 = vunpack.c.l.b16 %v244
  %v373 = vunpack.c.l.b16 %v245
  %v374 = vunpack.c.l.b16 %v246
  %v375 = vunpack.c.l.b16 %v247
  %v376 = vunpack.c.l.b16 %v248
  %v377 = vunpack.c.l.b16 %v249
  %v378 = vunpack.c.l.b16 %v250
  %v379 = vunpack.c.l.b16 %v251
  %v380 = vunpack.c.l.b16 %v252
  %v381 = vunpack.c.l.b16 %v253
  %v382 = vunpack.c.l.b16 %v254
  %v383 = vunpack.c.l.b16 %v255
  %v384 = vunpack.c.l.b16 %v256
  %v385 = vunpack.c.l.b16 %v257
  %v386 = vunpack.c.l.b16 %v258
  %v387 = vunpack.c.l.b16 %v259
  %v388 = vunpack.c.l.b16 %v260
  %v389 = vunpack.c.l.b16 %v261
  %v390 = vunpack.c.l.b16 %v262
  %v391 = vunpack.c.l.b16 %v263
  %v392 = vunpack.c.l.b16 %v264
  %v393 = vunpack.c.l.b16 %v265
  %v394 = vunpack.c.l.b16 %v266
  %v395 = vunpack.c.l.b16 %v267
  %v396 = vunpack.c.l.b16 %v268
  %v397 = vunpack.c.l.b16 %v269
  %v398 = vunpack.c.l.b16 %v270
  %v399 = vunpack.c.l.b16 %v271
  %v400 = vunpack.c.l.b16 %v272
  %v401 = vunpack.c.l.b16 %v273
  %v402 = vunpack.c.l.b16 %v274
  %v403 = vunpack.c.l.b16 %v275
  %v404 = vunpack.c.l.b16 %v276
  %v405 = vunpack.c.l.b16 %v277
  %v406 = vunpack.c.l.b16 %v278
  %v407 = vunpack.c.l.b16 %v279
  %v408 = vunpack.c.l.b16 %v280
  %v409 = vunpack.c.l.b16 %v281
  %v410 = vpack.c.b16 %v347, %v346
  %v411 = vpack.c.b16 %v349, %v348
  %v412 = vpack.c.b16 %v351, %v350
  %v413 = vpack.c.b16 %v353, %v352
  %v414 = vpack.c.b16 %v355, %v354
  %v415 = vpack.c.b16 %v357, %v356
  %v416 = vpack.c.b16 %v359, %v358
  %v417 = vpack.c.b16 %v361, %v360
  %v418 = vpack.c.b16 %v363, %v362
  %v419 = vpack.c.b16 %v365, %v364
  %v420 = vpack.c.b16 %v367, %v366
  %v421 = vpack.c.b16 %v369, %v368
  %v422 = vpack.c.b16 %v371, %v370
  %v423 = vpack.c.b16 %v373, %v372
  %v424 = vpack.c.b16 %v375, %v374
  %v425 = vpack.c.b16 %v377, %v376
  %v426 = vpack.c.b16 %v379, %v378
  %v427 = vpack.c.b16 %v381, %v380
  %v428 = vpack.c.b16 %v383, %v382
  %v429 = vpack.c.b16 %v385, %v384
  %v430 = vpack.c.b16 %v387, %v386
  %v431 = vpack.c.b16 %v389, %v388
  %v432 = vpack.c.b16 %v391, %v390
  %v433 = vpack.c.b16 %v393, %v392
  %v434 = vpack.c.b16 %v395, %v394
  %v435 = vpack.c.b16 %v397, %v396
  %v436 = vpack.c.b16 %v399, %v398
  %v437 = vpack.c.b16 %v401, %v400
  %v438 = vpack.c.b16 %v403, %v402
  %v439 = vpack.c.b16 %v405, %v404
  %v440 = vpack.c.b16 %v407, %v406
  %v441 = vpack.c.b16 %v409, %v408
  %474 = vmatprep.subr.bf16.mxu0 0
  %475 = vmatpush1.bf16.msra.mxu0 %v417
  %476 = vmatprep.subr.bf16.mxu0 0
  %477 = vmatpush1.bf16.msra.mxu0 %v416
  %478 = vmatprep.subr.bf16.mxu0 0
  %479 = vmatpush1.bf16.msra.mxu0 %v415
  %480 = vmatprep.subr.bf16.mxu0 0
  %481 = vmatpush1.bf16.msra.mxu0 %v414
  %482 = vmatprep.subr.bf16.mxu0 0
  %483 = vmatpush1.bf16.msra.mxu0 %v413
  %484 = vmatprep.subr.bf16.mxu0 0
  %485 = vmatpush1.bf16.msra.mxu0 %v412
  %486 = vmatprep.subr.bf16.mxu0 0
  %487 = vmatpush1.bf16.msra.mxu0 %v411
  %488 = vmatprep.subr.bf16.mxu0 0
  %489 = vmatpush1.bf16.msra.mxu0 %v410
  %490 = vmatprep.subr.bf16.mxu0 0
  %491 = vmatpush2.bf16.msra.mxu0 %v425
  %492 = vmatprep.subr.bf16.mxu0 0
  %493 = vmatpush2.bf16.msra.mxu0 %v424
  %494 = vmatprep.subr.bf16.mxu0 0
  %495 = vmatpush2.bf16.msra.mxu0 %v423
  %496 = vmatprep.subr.bf16.mxu0 0
  %497 = vmatpush2.bf16.msra.mxu0 %v422
  %498 = vmatprep.subr.bf16.mxu0 0
  %499 = vmatpush2.bf16.msra.mxu0 %v421
  %500 = vmatprep.subr.bf16.mxu0 0
  %501 = vmatpush2.bf16.msra.mxu0 %v420
  %502 = vmatprep.subr.bf16.mxu0 0
  %503 = vmatpush2.bf16.msra.mxu0 %v419
  %504 = vmatprep.subr.bf16.mxu0 0
  %505 = vmatpush2.bf16.msra.mxu0 %v418
  %506 = vmatprep.mubr.bf16.mxu0 %v155
  %507 = vmatmul.mubr.bf16.gmra.mxu0 %v154
  %v508 = vpop.f32.mrf.mxu0
  %v509 = vadd.f32 0.0, %v508
  %v510 = vpop.f32.mrf.mxu0
  %v511 = vpop.f32.mrf.mxu0
  %v512 = vadd.f32 0.0, %v511
  %v513 = vpop.f32.mrf.mxu0
  %514 = vmatprep.mubr.bf16.mxu0 %v159
  %515 = vmatmul.mubr.bf16.gmra.mxu0 %v158
  %v516 = vpop.f32.mrf.mxu0
  %v517 = vadd.f32 0.0, %v516
  %v518 = vpop.f32.mrf.mxu0
  %v519 = vpop.f32.mrf.mxu0
  %v520 = vadd.f32 0.0, %v519
  %v521 = vpop.f32.mrf.mxu0
  %522 = vmatprep.mubr.bf16.mxu0 %v163
  %523 = vmatmul.mubr.bf16.gmra.mxu0 %v162
  %v524 = vpop.f32.mrf.mxu0
  %v525 = vadd.f32 0.0, %v524
  %v526 = vpop.f32.mrf.mxu0
  %v527 = vpop.f32.mrf.mxu0
  %v528 = vadd.f32 0.0, %v527
  %v529 = vpop.f32.mrf.mxu0
  %530 = vmatprep.mubr.bf16.mxu0 %v167
  %531 = vmatmul.mubr.bf16.gmra.mxu0 %v166
  %v532 = vpop.f32.mrf.mxu0
  %v533 = vadd.f32 0.0, %v532
  %v534 = vpop.f32.mrf.mxu0
  %v535 = vpop.f32.mrf.mxu0
  %v536 = vadd.f32 0.0, %v535
  %v537 = vpop.f32.mrf.mxu0
  %538 = vmatprep.mubr.bf16.mxu0 %v171
  %539 = vmatmul.mubr.bf16.gmra.mxu0 %v170
  %v540 = vpop.f32.mrf.mxu0
  %v541 = vadd.f32 0.0, %v540
  %v542 = vpop.f32.mrf.mxu0
  %v543 = vpop.f32.mrf.mxu0
  %v544 = vadd.f32 0.0, %v543
  %v545 = vpop.f32.mrf.mxu0
  %546 = vmatprep.mubr.bf16.mxu0 %v175
  %547 = vmatmul.mubr.bf16.gmra.mxu0 %v174
  %v548 = vpop.f32.mrf.mxu0
  %v549 = vadd.f32 0.0, %v548
  %v550 = vpop.f32.mrf.mxu0
  %v551 = vpop.f32.mrf.mxu0
  %v552 = vadd.f32 0.0, %v551
  %v553 = vpop.f32.mrf.mxu0
  %554 = vmatprep.mubr.bf16.mxu0 %v179
  %555 = vmatmul.mubr.bf16.gmra.mxu0 %v178
  %v556 = vpop.f32.mrf.mxu0
  %v557 = vadd.f32 0.0, %v556
  %v558 = vpop.f32.mrf.mxu0
  %v559 = vpop.f32.mrf.mxu0
  %v560 = vadd.f32 0.0, %v559
  %v561 = vpop.f32.mrf.mxu0
  %562 = vmatprep.mubr.bf16.mxu0 %v183
  %563 = vmatmul.mubr.bf16.gmra.mxu0 %v182
  %v564 = vpop.f32.mrf.mxu0
  %v565 = vadd.f32 0.0, %v564
  %v566 = vpop.f32.mrf.mxu0
  %v567 = vpop.f32.mrf.mxu0
  %v568 = vadd.f32 0.0, %v567
  %v569 = vpop.f32.mrf.mxu0
  %570 = vmatprep.mubr.bf16.mxu0 %v187
  %571 = vmatmul.mubr.bf16.gmra.mxu0 %v186
  %v572 = vpop.f32.mrf.mxu0
  %v573 = vadd.f32 0.0, %v572
  %v574 = vpop.f32.mrf.mxu0
  %v575 = vpop.f32.mrf.mxu0
  %v576 = vadd.f32 0.0, %v575
  %v577 = vpop.f32.mrf.mxu0
  %578 = vmatprep.mubr.bf16.mxu0 %v191
  %579 = vmatmul.mubr.bf16.gmra.mxu0 %v190
  %v580 = vpop.f32.mrf.mxu0
  %v581 = vadd.f32 0.0, %v580
  %v582 = vpop.f32.mrf.mxu0
  %v583 = vpop.f32.mrf.mxu0
  %v584 = vadd.f32 0.0, %v583
  %v585 = vpop.f32.mrf.mxu0
  %586 = vmatprep.mubr.bf16.mxu0 %v195
  %587 = vmatmul.mubr.bf16.gmra.mxu0 %v194
  %v588 = vpop.f32.mrf.mxu0
  %v589 = vadd.f32 0.0, %v588
  %v590 = vpop.f32.mrf.mxu0
  %v591 = vpop.f32.mrf.mxu0
  %v592 = vadd.f32 0.0, %v591
  %v593 = vpop.f32.mrf.mxu0
  %594 = vmatprep.mubr.bf16.mxu0 %v199
  %595 = vmatmul.mubr.bf16.gmra.mxu0 %v198
  %v596 = vpop.f32.mrf.mxu0
  %v597 = vadd.f32 0.0, %v596
  %v598 = vpop.f32.mrf.mxu0
  %v599 = vpop.f32.mrf.mxu0
  %v600 = vadd.f32 0.0, %v599
  %v601 = vpop.f32.mrf.mxu0
  %602 = vmatprep.mubr.bf16.mxu0 %v203
  %603 = vmatmul.mubr.bf16.gmra.mxu0 %v202
  %v604 = vpop.f32.mrf.mxu0
  %v605 = vadd.f32 0.0, %v604
  %v606 = vpop.f32.mrf.mxu0
  %v607 = vpop.f32.mrf.mxu0
  %v608 = vadd.f32 0.0, %v607
  %v609 = vpop.f32.mrf.mxu0
  %610 = vmatprep.mubr.bf16.mxu0 %v207
  %611 = vmatmul.mubr.bf16.gmra.mxu0 %v206
  %v612 = vpop.f32.mrf.mxu0
  %v613 = vadd.f32 0.0, %v612
  %v614 = vpop.f32.mrf.mxu0
  %v615 = vpop.f32.mrf.mxu0
  %v616 = vadd.f32 0.0, %v615
  %v617 = vpop.f32.mrf.mxu0
  %618 = vmatprep.mubr.bf16.mxu0 %v211
  %619 = vmatmul.mubr.bf16.gmra.mxu0 %v210
  %v620 = vpop.f32.mrf.mxu0
  %v621 = vadd.f32 0.0, %v620
  %v622 = vpop.f32.mrf.mxu0
  %v623 = vpop.f32.mrf.mxu0
  %v624 = vadd.f32 0.0, %v623
  %v625 = vpop.f32.mrf.mxu0
  %626 = vmatprep.mubr.bf16.mxu0 %v215
  %627 = vmatmul.mubr.bf16.gmra.mxu0 %v214
  %v628 = vpop.f32.mrf.mxu0
  %v629 = vadd.f32 0.0, %v628
  %v630 = vpop.f32.mrf.mxu0
  %v631 = vpop.f32.mrf.mxu0
  %v632 = vadd.f32 0.0, %v631
  %v633 = vpop.f32.mrf.mxu0
  %634 = vdwg.mxu0
  %635 = vmatprep.subr.bf16.mxu0 0
  %636 = vmatpush1.bf16.msra.mxu0 %v433
  %637 = vmatprep.subr.bf16.mxu0 0
  %638 = vmatpush1.bf16.msra.mxu0 %v432
  %639 = vmatprep.subr.bf16.mxu0 0
  %640 = vmatpush1.bf16.msra.mxu0 %v431
  %641 = vmatprep.subr.bf16.mxu0 0
  %642 = vmatpush1.bf16.msra.mxu0 %v430
  %643 = vmatprep.subr.bf16.mxu0 0
  %644 = vmatpush1.bf16.msra.mxu0 %v429
  %645 = vmatprep.subr.bf16.mxu0 0
  %646 = vmatpush1.bf16.msra.mxu0 %v428
  %647 = vmatprep.subr.bf16.mxu0 0
  %648 = vmatpush1.bf16.msra.mxu0 %v427
  %649 = vmatprep.subr.bf16.mxu0 0
  %650 = vmatpush1.bf16.msra.mxu0 %v426
  %651 = vmatprep.subr.bf16.mxu0 0
  %652 = vmatpush2.bf16.msra.mxu0 %v441
  %653 = vmatprep.subr.bf16.mxu0 0
  %654 = vmatpush2.bf16.msra.mxu0 %v440
  %655 = vmatprep.subr.bf16.mxu0 0
  %656 = vmatpush2.bf16.msra.mxu0 %v439
  %657 = vmatprep.subr.bf16.mxu0 0
  %658 = vmatpush2.bf16.msra.mxu0 %v438
  %659 = vmatprep.subr.bf16.mxu0 0
  %660 = vmatpush2.bf16.msra.mxu0 %v437
  %661 = vmatprep.subr.bf16.mxu0 0
  %662 = vmatpush2.bf16.msra.mxu0 %v436
  %663 = vmatprep.subr.bf16.mxu0 0
  %664 = vmatpush2.bf16.msra.mxu0 %v435
  %665 = vmatprep.subr.bf16.mxu0 0
  %666 = vmatpush2.bf16.msra.mxu0 %v434
  %667 = vmatprep.mubr.bf16.mxu0 %v157
  %668 = vmatmul.mubr.bf16.gmra.mxu0 %v156
  %v669 = vpop.f32.mrf.mxu0
  %v670 = vadd.f32 %v509, %v669
  %v671 = vpop.f32.mrf.mxu0
  %v672 = vpop.f32.mrf.mxu0
  %v673 = vadd.f32 %v512, %v672
  %v674 = vpop.f32.mrf.mxu0
  %675 = vmatprep.mubr.bf16.mxu0 %v161
  %676 = vmatmul.mubr.bf16.gmra.mxu0 %v160
  %v677 = vpop.f32.mrf.mxu0
  %v678 = vadd.f32 %v517, %v677
  %v679 = vpop.f32.mrf.mxu0
  %v680 = vpop.f32.mrf.mxu0
  %v681 = vadd.f32 %v520, %v680
  %v682 = vpop.f32.mrf.mxu0
  %683 = vmatprep.mubr.bf16.mxu0 %v165
  %684 = vmatmul.mubr.bf16.gmra.mxu0 %v164
  %v685 = vpop.f32.mrf.mxu0
  %v686 = vadd.f32 %v525, %v685
  %v687 = vpop.f32.mrf.mxu0
  %v688 = vpop.f32.mrf.mxu0
  %v689 = vadd.f32 %v528, %v688
  %v690 = vpop.f32.mrf.mxu0
  %691 = vmatprep.mubr.bf16.mxu0 %v169
  %692 = vmatmul.mubr.bf16.gmra.mxu0 %v168
  %v693 = vpop.f32.mrf.mxu0
  %v694 = vadd.f32 %v533, %v693
  %v695 = vpop.f32.mrf.mxu0
  %v696 = vpop.f32.mrf.mxu0
  %v697 = vadd.f32 %v536, %v696
  %v698 = vpop.f32.mrf.mxu0
  %699 = vmatprep.mubr.bf16.mxu0 %v173
  %700 = vmatmul.mubr.bf16.gmra.mxu0 %v172
  %v701 = vpop.f32.mrf.mxu0
  %v702 = vadd.f32 %v541, %v701
  %v703 = vpop.f32.mrf.mxu0
  %v704 = vpop.f32.mrf.mxu0
  %v705 = vadd.f32 %v544, %v704
  %v706 = vpop.f32.mrf.mxu0
  %707 = vmatprep.mubr.bf16.mxu0 %v177
  %708 = vmatmul.mubr.bf16.gmra.mxu0 %v176
  %v709 = vpop.f32.mrf.mxu0
  %v710 = vadd.f32 %v549, %v709
  %v711 = vpop.f32.mrf.mxu0
  %v712 = vpop.f32.mrf.mxu0
  %v713 = vadd.f32 %v552, %v712
  %v714 = vpop.f32.mrf.mxu0
  %715 = vmatprep.mubr.bf16.mxu0 %v181
  %716 = vmatmul.mubr.bf16.gmra.mxu0 %v180
  %v717 = vpop.f32.mrf.mxu0
  %v718 = vadd.f32 %v557, %v717
  %v719 = vpop.f32.mrf.mxu0
  %v720 = vpop.f32.mrf.mxu0
  %v721 = vadd.f32 %v560, %v720
  %v722 = vpop.f32.mrf.mxu0
  %723 = vmatprep.mubr.bf16.mxu0 %v185
  %724 = vmatmul.mubr.bf16.gmra.mxu0 %v184
  %v725 = vpop.f32.mrf.mxu0
  %v726 = vadd.f32 %v565, %v725
  %v727 = vpop.f32.mrf.mxu0
  %v728 = vpop.f32.mrf.mxu0
  %v729 = vadd.f32 %v568, %v728
  %v730 = vpop.f32.mrf.mxu0
  %731 = vmatprep.mubr.bf16.mxu0 %v189
  %732 = vmatmul.mubr.bf16.gmra.mxu0 %v188
  %v733 = vpop.f32.mrf.mxu0
  %v734 = vadd.f32 %v573, %v733
  %v735 = vpop.f32.mrf.mxu0
  %v736 = vpop.f32.mrf.mxu0
  %v737 = vadd.f32 %v576, %v736
  %v738 = vpop.f32.mrf.mxu0
  %739 = vmatprep.mubr.bf16.mxu0 %v193
  %740 = vmatmul.mubr.bf16.gmra.mxu0 %v192
  %v741 = vpop.f32.mrf.mxu0
  %v742 = vadd.f32 %v581, %v741
  %v743 = vpop.f32.mrf.mxu0
  %v744 = vpop.f32.mrf.mxu0
  %v745 = vadd.f32 %v584, %v744
  %v746 = vpop.f32.mrf.mxu0
  %747 = vmatprep.mubr.bf16.mxu0 %v197
  %748 = vmatmul.mubr.bf16.gmra.mxu0 %v196
  %v749 = vpop.f32.mrf.mxu0
  %v750 = vadd.f32 %v589, %v749
  %v751 = vpop.f32.mrf.mxu0
  %v752 = vpop.f32.mrf.mxu0
  %v753 = vadd.f32 %v592, %v752
  %v754 = vpop.f32.mrf.mxu0
  %755 = vmatprep.mubr.bf16.mxu0 %v201
  %756 = vmatmul.mubr.bf16.gmra.mxu0 %v200
  %v757 = vpop.f32.mrf.mxu0
  %v758 = vadd.f32 %v597, %v757
  %v759 = vpop.f32.mrf.mxu0
  %v760 = vpop.f32.mrf.mxu0
  %v761 = vadd.f32 %v600, %v760
  %v762 = vpop.f32.mrf.mxu0
  %763 = vmatprep.mubr.bf16.mxu0 %v205
  %764 = vmatmul.mubr.bf16.gmra.mxu0 %v204
  %v765 = vpop.f32.mrf.mxu0
  %v766 = vadd.f32 %v605, %v765
  %v767 = vpop.f32.mrf.mxu0
  %v768 = vpop.f32.mrf.mxu0
  %v769 = vadd.f32 %v608, %v768
  %v770 = vpop.f32.mrf.mxu0
  %771 = vmatprep.mubr.bf16.mxu0 %v209
  %772 = vmatmul.mubr.bf16.gmra.mxu0 %v208
  %v773 = vpop.f32.mrf.mxu0
  %v774 = vadd.f32 %v613, %v773
  %v775 = vpop.f32.mrf.mxu0
  %v776 = vpop.f32.mrf.mxu0
  %v777 = vadd.f32 %v616, %v776
  %v778 = vpop.f32.mrf.mxu0
  %779 = vmatprep.mubr.bf16.mxu0 %v213
  %780 = vmatmul.mubr.bf16.gmra.mxu0 %v212
  %v781 = vpop.f32.mrf.mxu0
  %v782 = vadd.f32 %v621, %v781
  %v783 = vpop.f32.mrf.mxu0
  %v784 = vpop.f32.mrf.mxu0
  %v785 = vadd.f32 %v624, %v784
  %v786 = vpop.f32.mrf.mxu0
  %787 = vmatprep.mubr.bf16.mxu0 %v217
  %788 = vmatmul.mubr.bf16.gmra.mxu0 %v216
  %v789 = vpop.f32.mrf.mxu0
  %v790 = vadd.f32 %v629, %v789
  %v791 = vpop.f32.mrf.mxu0
  %v792 = vpop.f32.mrf.mxu0
  %v793 = vadd.f32 %v632, %v792
  %v794 = vpop.f32.mrf.mxu0
  %795 = vdwg.mxu0
  %v796 = vadd.f32 %v90, %v670
  %v797 = vadd.f32 %v91, %v673
  %v798 = vadd.f32 %v92, %v678
  %v799 = vadd.f32 %v93, %v681
  %v800 = vadd.f32 %v94, %v686
  %v801 = vadd.f32 %v95, %v689
  %v802 = vadd.f32 %v96, %v694
  %v803 = vadd.f32 %v97, %v697
  %v804 = vadd.f32 %v98, %v702
  %v805 = vadd.f32 %v99, %v705
  %v806 = vadd.f32 %v100, %v710
  %v807 = vadd.f32 %v101, %v713
  %v808 = vadd.f32 %v102, %v718
  %v809 = vadd.f32 %v103, %v721
  %v810 = vadd.f32 %v104, %v726
  %v811 = vadd.f32 %v105, %v729
  %v812 = vadd.f32 %v106, %v734
  %v813 = vadd.f32 %v107, %v737
  %v814 = vadd.f32 %v108, %v742
  %v815 = vadd.f32 %v109, %v745
  %v816 = vadd.f32 %v110, %v750
  %v817 = vadd.f32 %v111, %v753
  %v818 = vadd.f32 %v112, %v758
  %v819 = vadd.f32 %v113, %v761
  %v820 = vadd.f32 %v114, %v766
  %v821 = vadd.f32 %v115, %v769
  %v822 = vadd.f32 %v116, %v774
  %v823 = vadd.f32 %v117, %v777
  %v824 = vadd.f32 %v118, %v782
  %v825 = vadd.f32 %v119, %v785
  %v826 = vadd.f32 %v120, %v790
  %v827 = vadd.f32 %v121, %v793
  %vm828 = vcmask 261120
  %829 = vst.msk [vmem:[#allocation2] sm:$0xff] %vm828, %v796
  %830 = vst.msk [vmem:[#allocation2 + $0x8] sm:$0xff] %vm828, %v797
  %831 = vst.msk [vmem:[#allocation2 + $0x10] sm:$0xff] %vm828, %v798
  %832 = vst.msk [vmem:[#allocation2 + $0x18] sm:$0xff] %vm828, %v799
  %833 = vst.msk [vmem:[#allocation2 + $0x20] sm:$0xff] %vm828, %v800
  %834 = vst.msk [vmem:[#allocation2 + $0x28] sm:$0xff] %vm828, %v801
  %835 = vst.msk [vmem:[#allocation2 + $0x30] sm:$0xff] %vm828, %v802
  %836 = vst.msk [vmem:[#allocation2 + $0x38] sm:$0xff] %vm828, %v803
  %837 = vst.msk [vmem:[#allocation2 + $0x40] sm:$0xff] %vm828, %v804
  %838 = vst.msk [vmem:[#allocation2 + $0x48] sm:$0xff] %vm828, %v805
  %839 = vst.msk [vmem:[#allocation2 + $0x50] sm:$0xff] %vm828, %v806
  %840 = vst.msk [vmem:[#allocation2 + $0x58] sm:$0xff] %vm828, %v807
  %841 = vst.msk [vmem:[#allocation2 + $0x60] sm:$0xff] %vm828, %v808
  %842 = vst.msk [vmem:[#allocation2 + $0x68] sm:$0xff] %vm828, %v809
  %843 = vst.msk [vmem:[#allocation2 + $0x70] sm:$0xff] %vm828, %v810
  %844 = vst.msk [vmem:[#allocation2 + $0x78] sm:$0xff] %vm828, %v811
  %845 = vst.msk [vmem:[#allocation2 + $0x80] sm:$0xff] %vm828, %v812
  %846 = vst.msk [vmem:[#allocation2 + $0x88] sm:$0xff] %vm828, %v813
  %847 = vst.msk [vmem:[#allocation2 + $0x90] sm:$0xff] %vm828, %v814
  %848 = vst.msk [vmem:[#allocation2 + $0x98] sm:$0xff] %vm828, %v815
  %849 = vst.msk [vmem:[#allocation2 + $0xa0] sm:$0xff] %vm828, %v816
  %850 = vst.msk [vmem:[#allocation2 + $0xa8] sm:$0xff] %vm828, %v817
  %851 = vst.msk [vmem:[#allocation2 + $0xb0] sm:$0xff] %vm828, %v818
  %852 = vst.msk [vmem:[#allocation2 + $0xb8] sm:$0xff] %vm828, %v819
  %853 = vst.msk [vmem:[#allocation2 + $0xc0] sm:$0xff] %vm828, %v820
  %854 = vst.msk [vmem:[#allocation2 + $0xc8] sm:$0xff] %vm828, %v821
  %855 = vst.msk [vmem:[#allocation2 + $0xd0] sm:$0xff] %vm828, %v822
  %856 = vst.msk [vmem:[#allocation2 + $0xd8] sm:$0xff] %vm828, %v823
  %857 = vst.msk [vmem:[#allocation2 + $0xe0] sm:$0xff] %vm828, %v824
  %858 = vst.msk [vmem:[#allocation2 + $0xe8] sm:$0xff] %vm828, %v825
  %859 = vst.msk [vmem:[#allocation2 + $0xf0] sm:$0xff] %vm828, %v826
  %860 = vst.msk [vmem:[#allocation2 + $0xf8] sm:$0xff] %vm828, %v827
  // Predicated region
  $region26: #{tpu_custom_call.1} parent=0 // pred_check
    %p861 = pneg %p21
  $region27: #{tpu_custom_call.1} parent=0 // pred_check_branch
    %863 = sbr.rel (%p861) target = $region29
  $region28: #{tpu_custom_call.1} parent=0 // pred_region
    %v864 = vld [vmem:[#allocation2] sm:$0xff]
    %v865 = vld [vmem:[#allocation2 + $0x8] sm:$0xff]
    %v866 = vld [vmem:[#allocation2 + $0x10] sm:$0xff]
    %v867 = vld [vmem:[#allocation2 + $0x18] sm:$0xff]
    %v868 = vld [vmem:[#allocation2 + $0x20] sm:$0xff]
    %v869 = vld [vmem:[#allocation2 + $0x28] sm:$0xff]
    %v870 = vld [vmem:[#allocation2 + $0x30] sm:$0xff]
    %v871 = vld [vmem:[#allocation2 + $0x38] sm:$0xff]
    %v872 = vld [vmem:[#allocation2 + $0x40] sm:$0xff]
    %v873 = vld [vmem:[#allocation2 + $0x48] sm:$0xff]
    %v874 = vld [vmem:[#allocation2 + $0x50] sm:$0xff]
    %v875 = vld [vmem:[#allocation2 + $0x58] sm:$0xff]
    %v876 = vld [vmem:[#allocation2 + $0x60] sm:$0xff]
    %v877 = vld [vmem:[#allocation2 + $0x68] sm:$0xff]
    %v878 = vld [vmem:[#allocation2 + $0x70] sm:$0xff]
    %v879 = vld [vmem:[#allocation2 + $0x78] sm:$0xff]
    %v880 = vld [vmem:[#allocation2 + $0x80] sm:$0xff]
    %v881 = vld [vmem:[#allocation2 + $0x88] sm:$0xff]
    %v882 = vld [vmem:[#allocation2 + $0x90] sm:$0xff]
    %v883 = vld [vmem:[#allocation2 + $0x98] sm:$0xff]
    %v884 = vld [vmem:[#allocation2 + $0xa0] sm:$0xff]
    %v885 = vld [vmem:[#allocation2 + $0xa8] sm:$0xff]
    %v886 = vld [vmem:[#allocation2 + $0xb0] sm:$0xff]
    %v887 = vld [vmem:[#allocation2 + $0xb8] sm:$0xff]
    %v888 = vld [vmem:[#allocation2 + $0xc0] sm:$0xff]
    %v889 = vld [vmem:[#allocation2 + $0xc8] sm:$0xff]
    %v890 = vld [vmem:[#allocation2 + $0xd0] sm:$0xff]
    %v891 = vld [vmem:[#allocation2 + $0xd8] sm:$0xff]
    %v892 = vld [vmem:[#allocation2 + $0xe0] sm:$0xff]
    %v893 = vld [vmem:[#allocation2 + $0xe8] sm:$0xff]
    %v894 = vld [vmem:[#allocation2 + $0xf0] sm:$0xff]
    %v895 = vld [vmem:[#allocation2 + $0xf8] sm:$0xff]
    %v896 = vmax.f32 %v864, 0.0
    %v897 = vmax.f32 %v865, 0.0
    %v898 = vmax.f32 %v866, 0.0
    %v899 = vmax.f32 %v867, 0.0
    %v900 = vmax.f32 %v868, 0.0
    %v901 = vmax.f32 %v869, 0.0
    %v902 = vmax.f32 %v870, 0.0
    %v903 = vmax.f32 %v871, 0.0
    %v904 = vmax.f32 %v872, 0.0
    %v905 = vmax.f32 %v873, 0.0
    %v906 = vmax.f32 %v874, 0.0
    %v907 = vmax.f32 %v875, 0.0
    %v908 = vmax.f32 %v876, 0.0
    %v909 = vmax.f32 %v877, 0.0
    %v910 = vmax.f32 %v878, 0.0
    %v911 = vmax.f32 %v879, 0.0
    %v912 = vmax.f32 %v880, 0.0
    %v913 = vmax.f32 %v881, 0.0
    %v914 = vmax.f32 %v882, 0.0
    %v915 = vmax.f32 %v883, 0.0
    %v916 = vmax.f32 %v884, 0.0
    %v917 = vmax.f32 %v885, 0.0
    %v918 = vmax.f32 %v886, 0.0
    %v919 = vmax.f32 %v887, 0.0
    %v920 = vmax.f32 %v888, 0.0
    %v921 = vmax.f32 %v889, 0.0
    %v922 = vmax.f32 %v890, 0.0
    %v923 = vmax.f32 %v891, 0.0
    %v924 = vmax.f32 %v892, 0.0
    %v925 = vmax.f32 %v893, 0.0
    %v926 = vmax.f32 %v894, 0.0
    %v927 = vmax.f32 %v895, 0.0
    %v928 = vld [vmem:[%s0] sm:$0x3]
    %v930 = vlaneseq
    %v931 = vshrl.u32 %v930, 7
    %v932 = vsub.s32 0, %v931
    %v933 = vrot.slane %v928, %v932
    %v934 = vlaneseq
    %v935 = vshrl.u32 %v934, 7
    %v936 = vsub.s32 1, %v935
    %v937 = vrot.slane %v928, %v936
    %940 = vmatprep.subr.mxu0 0.0
    %941 = vmatpush1.msra.mxu0 %v911
    %942 = vmatprep.subr.mxu0 0.0
    %943 = vmatpush1.msra.mxu0 %v910
    %944 = vmatprep.subr.mxu0 0.0
    %945 = vmatpush1.msra.mxu0 %v909
    %946 = vmatprep.subr.mxu0 0.0
    %947 = vmatpush1.msra.mxu0 %v908
    %948 = vmatprep.subr.mxu0 0.0
    %949 = vmatpush1.msra.mxu0 %v907
    %950 = vmatprep.subr.mxu0 0.0
    %951 = vmatpush1.msra.mxu0 %v906
    %952 = vmatprep.subr.mxu0 0.0
    %953 = vmatpush1.msra.mxu0 %v905
    %954 = vmatprep.subr.mxu0 0.0
    %955 = vmatpush1.msra.mxu0 %v904
    %956 = vmatprep.subr.mxu0 0.0
    %957 = vmatpush1.msra.mxu0 %v903
    %958 = vmatprep.subr.mxu0 0.0
    %959 = vmatpush1.msra.mxu0 %v902
    %960 = vmatprep.subr.mxu0 0.0
    %961 = vmatpush1.msra.mxu0 %v901
    %962 = vmatprep.subr.mxu0 0.0
    %963 = vmatpush1.msra.mxu0 %v900
    %964 = vmatprep.subr.mxu0 0.0
    %965 = vmatpush1.msra.mxu0 %v899
    %966 = vmatprep.subr.mxu0 0.0
    %967 = vmatpush1.msra.mxu0 %v898
    %968 = vmatprep.subr.mxu0 0.0
    %969 = vmatpush1.msra.mxu0 %v897
    %970 = vmatprep.subr.mxu0 0.0
    %971 = vmatpush1.msra.mxu0 %v896
    %972 = vmatprep.subr.mxu0 0.0
    %973 = vmatpush2.msra.mxu0 %v927
    %974 = vmatprep.subr.mxu0 0.0
    %975 = vmatpush2.msra.mxu0 %v926
    %976 = vmatprep.subr.mxu0 0.0
    %977 = vmatpush2.msra.mxu0 %v925
    %978 = vmatprep.subr.mxu0 0.0
    %979 = vmatpush2.msra.mxu0 %v924
    %980 = vmatprep.subr.mxu0 0.0
    %981 = vmatpush2.msra.mxu0 %v923
    %982 = vmatprep.subr.mxu0 0.0
    %983 = vmatpush2.msra.mxu0 %v922
    %984 = vmatprep.subr.mxu0 0.0
    %985 = vmatpush2.msra.mxu0 %v921
    %986 = vmatprep.subr.mxu0 0.0
    %987 = vmatpush2.msra.mxu0 %v920
    %988 = vmatprep.subr.mxu0 0.0
    %989 = vmatpush2.msra.mxu0 %v919
    %990 = vmatprep.subr.mxu0 0.0
    %991 = vmatpush2.msra.mxu0 %v918
    %992 = vmatprep.subr.mxu0 0.0
    %993 = vmatpush2.msra.mxu0 %v917
    %994 = vmatprep.subr.mxu0 0.0
    %995 = vmatpush2.msra.mxu0 %v916
    %996 = vmatprep.subr.mxu0 0.0
    %997 = vmatpush2.msra.mxu0 %v915
    %998 = vmatprep.subr.mxu0 0.0
    %999 = vmatpush2.msra.mxu0 %v914
    %1000 = vmatprep.subr.mxu0 0.0
    %1001 = vmatpush2.msra.mxu0 %v913
    %1002 = vmatprep.subr.mxu0 0.0
    %1003 = vmatpush2.msra.mxu0 %v912
    %1004 = vmatprep.mubr.f32.mxu0 %v937
    %1005 = vmatmul.mubr.f32.gmra.mxu0 %v933
    %v1006 = vpop.f32.mrf.mxu0
    %v1007 = vadd.f32 0.0, %v1006
    %v1008 = vpop.f32.mrf.mxu0
    %1009 = vdwg.mxu0
    %v1010 = vld [vmem:[%s4] sm:$0xff]
    %v1011 = vld [vmem:[%s4 + $0x8] sm:$0xff]
    %v1012 = vld [vmem:[%s4 + $0x10] sm:$0xff]
    %v1013 = vld [vmem:[%s4 + $0x18] sm:$0xff]
    %v1015 = vsel %vm828, %v1007, 0
    %1017 = vmatprep.subr.mxu0 0.0
    %1018 = vmatpush1.msra.mxu0 0.0
    %1019 = vmatprep.subr.mxu0 0.0
    %1020 = vmatpush1.msra.mxu0 0.0
    %1021 = vmatprep.subr.mxu0 0.0
    %1022 = vmatpush1.msra.mxu0 0.0
    %1023 = vmatprep.subr.mxu0 0.0
    %1024 = vmatpush1.msra.mxu0 0.0
    %1025 = vmatprep.subr.mxu0 0.0
    %1026 = vmatpush1.msra.mxu0 0.0
    %1027 = vmatprep.subr.mxu0 0.0
    %1028 = vmatpush1.msra.mxu0 0.0
    %1029 = vmatprep.subr.mxu0 0.0
    %1030 = vmatpush1.msra.mxu0 0.0
    %1031 = vmatprep.subr.mxu0 0.0
    %1032 = vmatpush1.msra.mxu0 0.0
    %1033 = vmatprep.subr.mxu0 0.0
    %1034 = vmatpush1.msra.mxu0 0.0
    %1035 = vmatprep.subr.mxu0 0.0
    %1036 = vmatpush1.msra.mxu0 0.0
    %1037 = vmatprep.subr.mxu0 0.0
    %1038 = vmatpush1.msra.mxu0 0.0
    %1039 = vmatprep.subr.mxu0 0.0
    %1040 = vmatpush1.msra.mxu0 0.0
    %1041 = vmatprep.subr.mxu0 0.0
    %1042 = vmatpush1.msra.mxu0 %v1013
    %1043 = vmatprep.subr.mxu0 0.0
    %1044 = vmatpush1.msra.mxu0 %v1012
    %1045 = vmatprep.subr.mxu0 0.0
    %1046 = vmatpush1.msra.mxu0 %v1011
    %1047 = vmatprep.subr.mxu0 0.0
    %1048 = vmatpush1.msra.mxu0 %v1010
    %1049 = vmatprep.subr.mxu0 0.0
    %1050 = vmatpush2.msra.mxu0 0.0
    %1051 = vmatprep.subr.mxu0 0.0
    %1052 = vmatpush2.msra.mxu0 0.0
    %1053 = vmatprep.subr.mxu0 0.0
    %1054 = vmatpush2.msra.mxu0 0.0
    %1055 = vmatprep.subr.mxu0 0.0
    %1056 = vmatpush2.msra.mxu0 0.0
    %1057 = vmatprep.subr.mxu0 0.0
    %1058 = vmatpush2.msra.mxu0 0.0
    %1059 = vmatprep.subr.mxu0 0.0
    %1060 = vmatpush2.msra.mxu0 0.0
    %1061 = vmatprep.subr.mxu0 0.0
    %1062 = vmatpush2.msra.mxu0 0.0
    %1063 = vmatprep.subr.mxu0 0.0
    %1064 = vmatpush2.msra.mxu0 0.0
    %1065 = vmatprep.subr.mxu0 0.0
    %1066 = vmatpush2.msra.mxu0 0.0
    %1067 = vmatprep.subr.mxu0 0.0
    %1068 = vmatpush2.msra.mxu0 0.0
    %1069 = vmatprep.subr.mxu0 0.0
    %1070 = vmatpush2.msra.mxu0 0.0
    %1071 = vmatprep.subr.mxu0 0.0
    %1072 = vmatpush2.msra.mxu0 0.0
    %1073 = vmatprep.subr.mxu0 0.0
    %1074 = vmatpush2.msra.mxu0 0.0
    %1075 = vmatprep.subr.mxu0 0.0
    %1076 = vmatpush2.msra.mxu0 0.0
    %1077 = vmatprep.subr.mxu0 0.0
    %1078 = vmatpush2.msra.mxu0 0.0
    %1079 = vmatprep.subr.mxu0 0.0
    %1080 = vmatpush2.msra.mxu0 0.0
    %1081 = vmatprep.mubr.f32.mxu0 0.0
    %1082 = vmatmul.mubr.f32.gmra.mxu0 %v1015
    %v1083 = vpop.f32.mrf.mxu0
    %v1084 = vadd.f32 0.0, %v1083
    %v1085 = vpop.f32.mrf.mxu0
    %1086 = vdwg.mxu0
    %v1087 = vlaneseq
    %v1088 = vshrl.u32 %v1087, 7
    %v1089 = vsub.s32 0, %v1088
    %v1090 = vrot.slane %v1084, %v1089
    %vm1091 = vcmask 31744
    %1092 = vst.msk [vmem:[%s5] sm:$0xff] %vm1091, %v1090
  $region29: #{tpu_custom_call.1} parent=0 // pred_fallthru
    _
  // Predicated region
  $region30: #{tpu_custom_call.1} parent=0 // pred_check
    _
  $region31: #{tpu_custom_call.1} parent=0 // pred_check_branch
    %1094 = sbr.rel (0) target = $region33
  $region32: #{tpu_custom_call.1} parent=0 // pred_region
    _
  $region33: #{tpu_custom_call.1} parent=0 // pred_fallthru
    _
  // Predicated region
  $region34: #{tpu_custom_call.1} parent=0 // pred_check
    _
  $region35: #{tpu_custom_call.1} parent=0 // pred_check_branch
    %1096 = sbr.rel (0) target = $region37
  $region36: #{tpu_custom_call.1} parent=0 // pred_region
    _
  $region37: #{tpu_custom_call.1} parent=0 // pred_fallthru
    _

</llo_original>
